<compile_context>
chip_gen: v7x
topology: tpu7x:2x2x1
jax: 0.10.0
libtpu: 0.0.40
codegen_flags: <defaults>
</compile_context>

<pallas_src>
import functools

import jax
import jax.numpy as jnp
import numpy as np
from jax import lax
from jax.experimental import pallas as pl
from jax.experimental.pallas import tpu as pltpu

_LANES = 128
_MAX_BLOCK_ROWS = 4096        # 4096 * 128 * 4 B = 2 MiB per f32 input per buffer


def _round_up(x, m):
    return -(-x // m) * m


# ----------------------------- Pallas kernel -------------------------------
def _bce_blur_kernel(pred_ref, true_ref, out_ref, *, inv_alpha, remaining,
                     needs_mask):
    c = pl.program_id(0)          # megacore (parallel) axis
    s = pl.program_id(1)          # reduction (arbitrary) axis

    @pl.when(s == 0)
    def _init():
        out_ref[...] = jnp.zeros_like(out_ref)

    # Load at native dtype, cast to f32 for the math (free for f32 inputs,
    # halves HBM traffic for bf16 inputs vs. a wrapper-side astype).
    x = pred_ref[...].astype(jnp.float32)
    t = true_ref[...].astype(jnp.float32)

    # Numerically-stable BCE-with-logits (PyTorch formula, reduction='none').
    e = jnp.exp(-jnp.abs(x))                          # EUP; reused below
    bce = jnp.maximum(x, 0.0) - x * t + jnp.log1p(e)

    # sigmoid(x) from the same exp:  x >= 0 -> 1/(1+e),  x < 0 -> e/(1+e)
    recip = 1.0 / (1.0 + e)
    sig = jnp.where(x >= 0.0, recip, e * recip)

    dx = sig - t
    alpha_factor = 1.0 - jnp.exp((dx - 1.0) * inv_alpha)
    loss = bce * alpha_factor

    def _accumulate(vals):
        # (block_rows,128) -> (1, block_rows//8, 8, 128); sum over axis 1 is
        # pure vreg-wise VPU adds (no per-step XLU reduce). Matches the
        # resident (1,8,128) output/accumulator block.
        out_ref[...] += jnp.sum(vals.reshape(1, -1, 8, _LANES), axis=1)

    if needs_mask:                                    # compiled out when aligned
        # Only the very last block of the whole range can contain padding /
        # out-of-range rows; gate the mask work onto that single step.
        is_tail = jnp.logical_and(c == pl.num_programs(0) - 1,
                                  s == pl.num_programs(1) - 1)

        @pl.when(is_tail)
        def _masked():
            br = loss.shape[0]
            row_ids = lax.broadcasted_iota(jnp.int32, (br, _LANES), 0)
            lane_ids = lax.broadcasted_iota(jnp.int32, (br, _LANES), 1)
            in_block = row_ids * _LANES + lane_ids    # offset within this block
            _accumulate(jnp.where(in_block < remaining, loss, 0.0))

        @pl.when(jnp.logical_not(is_tail))
        def _unmasked():
            _accumulate(loss)
    else:
        _accumulate(loss)


# ------------------------------- wrapper ------------------------------------
def bce_blur_with_logits_loss(pred, true, *, alpha=0.05):
    """Pallas TPU BCEBlurWithLogitsLoss. Returns the scalar mean loss."""
    assert pred.shape == true.shape, (pred.shape, true.shape)
    total = int(np.prod(pred.shape))
    assert total > 0

    # Flatten at native dtype (layout-compatible -> no HBM copy).
    p_flat = jnp.reshape(pred, (-1,))
    t_flat = jnp.reshape(true, (-1,))

    # Lane-dense (rows, 128) slab. Pad only to the next multiple of 128
    # (<= 127 elements) and only when actually unaligned.
    rows = -(-total // _LANES)
    padded = rows * _LANES
    if padded != total:
        p_flat = jnp.pad(p_flat, (0, padded - total))
        t_flat = jnp.pad(t_flat, (0, padded - total))
    p2 = p_flat.reshape(rows, _LANES)
    t2 = t_flat.reshape(rows, _LANES)

    # Block rows: multiple of 16 (covers f32 and bf16 sublane tiles), big
    # enough to amortize per-step overhead, small enough for v7x VMEM.
    block_rows = min(_MAX_BLOCK_ROWS, _round_up(rows, 16))
    nblocks = -(-rows // block_rows)       # ragged last block handled in-kernel

    # Megacore split (v7x has 2 TensorCores); only when it divides evenly so
    # neither core is ever handed an entirely out-of-range block.
    ncores = 2 if (nblocks >= 2 and nblocks % 2 == 0) else 1
    steps = nblocks // ncores

    covered = nblocks * block_rows * _LANES
    needs_mask = covered != total
    # Valid elements inside the final block (static Python int, no overflow).
    remaining = total - (nblocks - 1) * block_rows * _LANES

    kernel = functools.partial(
        _bce_blur_kernel,
        inv_alpha=float(1.0 / (alpha + 1e-4)),
        remaining=int(remaining),
        needs_mask=bool(needs_mask),
    )

    partials = pl.pallas_call(
        kernel,
        out_shape=jax.ShapeDtypeStruct((ncores, 8, _LANES), jnp.float32),
        grid_spec=pltpu.PrefetchScalarGridSpec(
            num_scalar_prefetch=0,
            grid=(ncores, steps),
            in_specs=[
                pl.BlockSpec((block_rows, _LANES),
                             lambda c, s: (c * steps + s, 0)),
                pl.BlockSpec((block_rows, _LANES),
                             lambda c, s: (c * steps + s, 0)),
            ],
            out_specs=pl.BlockSpec((1, 8, _LANES), lambda c, s: (c, 0, 0)),
        ),
        compiler_params=pltpu.CompilerParams(
            dimension_semantics=("parallel", "arbitrary"),
            vmem_limit_bytes=32 * 1024 * 1024,
        ),
    )(p2, t2)

    # Tiny (ncores*8*128) final reduce + mean in plain JAX.
    return jnp.sum(partials) / jnp.float32(total)


# ------------------------- pure-JAX reference -------------------------------
def reference_forward(pred, true, alpha=0.05):
    x = pred.astype(jnp.float32)
    t = true.astype(jnp.float32)
    bce = jnp.maximum(x, 0.0) - x * t + jnp.log1p(jnp.exp(-jnp.abs(x)))
    p = jax.nn.sigmoid(x)
    dx = p - t
    alpha_factor = 1.0 - jnp.exp((dx - 1.0) / (alpha + 1e-4))
    return jnp.mean(bce * alpha_factor)


# --------------------------------- main --------------------------------------
if __name__ == "__main__":
    key = jax.random.PRNGKey(0)

    shapes = [
        (2, 4, 16, 16),     # aligned: single block, no tail mask
        (2, 3, 50, 37),     # unaligned: exercises the in-kernel tail mask
        (4, 3, 80, 80),     # larger: still a single big block
        (8, 3, 160, 160),   # multi-block: 2 grid blocks + megacore split + ragged tail
    ]
    for shape in shapes:
        kp, kt, key = jax.random.split(key, 3)
        pred = 2.0 * jax.random.normal(kp, shape, jnp.float32)
        true = (jax.random.uniform(kt, shape) > 0.5).astype(jnp.float32)

        out = jax.block_until_ready(
            bce_blur_with_logits_loss(pred, true, alpha=0.05))
        ref = reference_forward(pred, true, alpha=0.05)
        np.testing.assert_allclose(np.asarray(out), np.asarray(ref),
                                   rtol=5e-4, atol=1e-5)

    print("KERNEL_OK")
</pallas_src>

<mosaic_0001>
module attributes {stable_mosaic.version = 11 : i64} {
  func.func @_bce_blur_kernel(%arg0: i32, %arg1: i32, %arg2: memref<16x128xf32, #tpu.memory_space<vmem>>, %arg3: memref<16x128xf32, #tpu.memory_space<vmem>>, %arg4: memref<1x8x128xf32, #tpu.memory_space<vmem>>) attributes {dimension_semantics = [#tpu.dimension_semantics<parallel>, #tpu.dimension_semantics<arbitrary>], iteration_bounds = array<i64: 1, 1>, scalar_prefetch = 0 : i64, scratch_operands = 0 : i64, tpu.core_type = #tpu.core_type<tc>, window_params = [{transform_indices = @transform_0, window_bounds = array<i64: 16, 128>}, {transform_indices = @transform_1, window_bounds = array<i64: 16, 128>}, {transform_indices = @transform_2, window_bounds = array<i64: 1, 8, 128>}]} {
    %c0_i32 = arith.constant 0 : i32
    %0 = arith.cmpi eq, %arg1, %c0_i32 : i32
    %1 = arith.extui %0 : i1 to i32
    %c0_i32_0 = arith.constant 0 : i32
    %2 = arith.cmpi ne, %1, %c0_i32_0 : i32
    scf.if %2 {
      %cst_18 = arith.constant 0.000000e+00 : f32
      %37 = vector.broadcast %cst_18 : f32 to vector<1x8x128xf32>
      %c0_19 = arith.constant 0 : index
      %c0_20 = arith.constant 0 : index
      %c0_21 = arith.constant 0 : index
      %38 = vector.load %arg4[%c0_19, %c0_20, %c0_21] : memref<1x8x128xf32, #tpu.memory_space<vmem>>, vector<1x8x128xf32>
      tpu.vector_store %arg4[%c0_19, %c0_20, %c0_21], %37 {strides = array<i32>} : memref<1x8x128xf32, #tpu.memory_space<vmem>>, vector<1x8x128xf32>,
    } else {
    }
    %c0 = arith.constant 0 : index
    %c0_1 = arith.constant 0 : index
    %3 = vector.load %arg2[%c0, %c0_1] : memref<16x128xf32, #tpu.memory_space<vmem>>, vector<16x128xf32>
    %c0_2 = arith.constant 0 : index
    %c0_3 = arith.constant 0 : index
    %4 = vector.load %arg3[%c0_2, %c0_3] : memref<16x128xf32, #tpu.memory_space<vmem>>, vector<16x128xf32>
    %5 = math.absf %3 : vector<16x128xf32>
    %cst = arith.constant 0.000000e+00 : f32
    %6 = vector.broadcast %cst : f32 to vector<16x128xf32>
    %7 = arith.subf %6, %5 : vector<16x128xf32>
    %8 = math.exp %7 : vector<16x128xf32>
    %cst_4 = arith.constant 0.000000e+00 : f32
    %9 = vector.broadcast %cst_4 : f32 to vector<16x128xf32>
    %10 = arith.maximumf %3, %9 : vector<16x128xf32>
    %11 = arith.mulf %3, %4 : vector<16x128xf32>
    %12 = arith.subf %10, %11 : vector<16x128xf32>
    %13 = math.log1p %8 : vector<16x128xf32>
    %14 = arith.addf %12, %13 : vector<16x128xf32>
    %cst_5 = arith.constant 1.000000e+00 : f32
    %15 = vector.broadcast %cst_5 : f32 to vector<16x128xf32>
    %16 = arith.addf %15, %8 : vector<16x128xf32>
    %cst_6 = arith.constant 1.000000e+00 : f32
    %17 = vector.broadcast %cst_6 : f32 to vector<16x128xf32>
    %18 = arith.divf %17, %16 : vector<16x128xf32>
    %cst_7 = arith.constant 0.000000e+00 : f32
    %19 = vector.broadcast %cst_7 : f32 to vector<16x128xf32>
    %20 = arith.cmpf oge, %3, %19 : vector<16x128xf32>
    %21 = arith.mulf %8, %18 : vector<16x128xf32>
    %22 = arith.select %20, %18, %21 : vector<16x128xi1>, vector<16x128xf32>
    %23 = arith.subf %22, %4 : vector<16x128xf32>
    %cst_8 = arith.constant 1.000000e+00 : f32
    %24 = vector.broadcast %cst_8 : f32 to vector<16x128xf32>
    %25 = arith.subf %23, %24 : vector<16x128xf32>
    %cst_9 = arith.constant 19.9600792 : f32
    %26 = vector.broadcast %cst_9 : f32 to vector<16x128xf32>
    %27 = arith.mulf %25, %26 : vector<16x128xf32>
    %28 = math.exp %27 : vector<16x128xf32>
    %cst_10 = arith.constant 1.000000e+00 : f32
    %29 = vector.broadcast %cst_10 : f32 to vector<16x128xf32>
    %30 = arith.subf %29, %28 : vector<16x128xf32>
    %31 = arith.mulf %14, %30 : vector<16x128xf32>
    %c0_11 = arith.constant 0 : index
    %c0_12 = arith.constant 0 : index
    %c0_13 = arith.constant 0 : index
    %32 = vector.load %arg4[%c0_11, %c0_12, %c0_13] : memref<1x8x128xf32, #tpu.memory_space<vmem>>, vector<1x8x128xf32>
    %33 = vector.shape_cast %31 : vector<16x128xf32> to vector<1x2x8x128xf32>
    %cst_14 = arith.constant dense<0.000000e+00> : vector<1x8x128xf32>
    %34 = vector.multi_reduction <add>, %33, %cst_14 [1] : vector<1x2x8x128xf32> to vector<1x8x128xf32>
    %35 = arith.addf %32, %34 : vector<1x8x128xf32>
    %c0_15 = arith.constant 0 : index
    %c0_16 = arith.constant 0 : index
    %c0_17 = arith.constant 0 : index
    %36 = vector.load %arg4[%c0_15, %c0_16, %c0_17] : memref<1x8x128xf32, #tpu.memory_space<vmem>>, vector<1x8x128xf32>
    tpu.vector_store %arg4[%c0_15, %c0_16, %c0_17], %35 {strides = array<i32>} : memref<1x8x128xf32, #tpu.memory_space<vmem>>, vector<1x8x128xf32>,
    return
  }
  func.func @transform_0(%arg0: i32, %arg1: i32) -> (i32, i32) {
    %c1_i32 = arith.constant 1 : i32
    %0 = arith.muli %arg0, %c1_i32 : i32
    %1 = arith.addi %0, %arg1 : i32
    %c0_i32 = arith.constant 0 : i32
    %c0_i32_0 = arith.constant 0 : i32
    return %1, %c0_i32 : i32, i32
  }
  func.func @transform_1(%arg0: i32, %arg1: i32) -> (i32, i32) {
    %c1_i32 = arith.constant 1 : i32
    %0 = arith.muli %arg0, %c1_i32 : i32
    %1 = arith.addi %0, %arg1 : i32
    %c0_i32 = arith.constant 0 : i32
    %c0_i32_0 = arith.constant 0 : i32
    return %1, %c0_i32 : i32, i32
  }
  func.func @transform_2(%arg0: i32, %arg1: i32) -> (i32, i32, i32) {
    %c0_i32 = arith.constant 0 : i32
    %c0_i32_0 = arith.constant 0 : i32
    %c0_i32_1 = arith.constant 0 : i32
    return %arg0, %c0_i32, %c0_i32_0 : i32, i32, i32
  }
}

</mosaic_0001>

<llo_original>
// kernel: tpu_custom_call.1
$region0: #{tpu_custom_call.1}
  #allocation0 [shape = 'u32[]', space=smem, size = 0x4, offset = 0x4, fixed_abs, tag = 'smem constant byte address 0x4 - core index']
  #allocation1 [shape = 'u32[144,128]{1,0:T(1,128)}', space=vmem, size = 0x12000, scoped, tag = 'internal scratch']
  %s0 = inlined_call_operand.hbm [shape: f32[16,128], index: 0, kind: input, shape index: {}]
  %s1 = inlined_call_operand.hbm [shape: f32[16,128], index: 1, kind: input, shape index: {}]
  %s2 = inlined_call_operand.hbm [shape: f32[1,8,128], index: 2, kind: output, shape index: {}]
  %s3 = sld [smem:[#allocation0]]
  $region30: #{tpu_custom_call.1} parent=0
    _
  %s5 = ssub.s32 1, %s3
  %s6 = scalar_select 0, %s5, %s3
  $region1: #{tpu_custom_call.1} parent=0
    #allocation2 [shape = 'u8[8192]{0}', space=vmem, size = 0x2000, scoped, tag = 'input window, operand 0, single buffered']
    #allocation3 [shape = 's32[1]{0}', space=sflag, size = 0x4, scoped, tag = 'scoped memory for tpu_custom_call.1']
    #allocation4 [shape = 's32[1]{0}', space=sflag, size = 0x4, scoped, tag = 'scoped memory for tpu_custom_call.1']
    #allocation5 [shape = 'u8[8192]{0}', space=vmem, size = 0x2000, scoped, tag = 'input window, operand 1, single buffered']
    #allocation6 [shape = 's32[1]{0}', space=sflag, size = 0x4, scoped, tag = 'scoped memory for tpu_custom_call.1']
    #allocation7 [shape = 'u8[4096]{0}', space=vmem, size = 0x1000, scoped, tag = 'output window, operand 0, single buffered']
    %7 = vsyncpa [#allocation3], 0
    %8 = vsyncpa [#allocation6], 0
    %9 = vsyncpa [#allocation4], 0
    // Predicated region
    $region2: #{tpu_custom_call.1} parent=1 // pred_check
      _
    $region3: #{tpu_custom_call.1} parent=1 // pred_check_branch
      %11 = sbr.rel (0) target = $region5
    $region4: #{tpu_custom_call.1} parent=1 // pred_region
      %s12 = sadd.s32 0, 0
      %s13 = smul.u32 2, %s12
      %s15 = ssub.s32 256, 256
      %16 = vsyncadd [#allocation3], %s15
      %s17 = smul.addr %s13, 128
      %s18 = scalar_lea.hbm %s0, %s17
      %s19 = sshll.u32 [#allocation2], 4
      %s20 = int_to_ptr.vmem [resolvable:$true] %s19
      %25 = dma.hbm_to_vmem [thread:$0]  %s18, 256, %s20, [#allocation3], 128, 128, 8
    $region5: #{tpu_custom_call.1} parent=1 // pred_fallthru
      _
    // Predicated region
    $region6: #{tpu_custom_call.1} parent=1 // pred_check
      _
    $region7: #{tpu_custom_call.1} parent=1 // pred_check_branch
      %27 = sbr.rel (0) target = $region9
    $region8: #{tpu_custom_call.1} parent=1 // pred_region
      %s28 = sadd.s32 0, 0
      %s29 = smul.u32 2, %s28
      %s31 = ssub.s32 256, 256
      %32 = vsyncadd [#allocation6], %s31
      %s33 = smul.addr %s29, 128
      %s34 = scalar_lea.hbm %s1, %s33
      %s35 = sshll.u32 [#allocation5], 4
      %s36 = int_to_ptr.vmem [resolvable:$true] %s35
      %41 = dma.hbm_to_vmem [thread:$0]  %s34, 256, %s36, [#allocation6], 128, 128, 8
    $region9: #{tpu_custom_call.1} parent=1 // pred_fallthru
      _
    // Predicated region
    $region10: #{tpu_custom_call.1} parent=1 // pred_check
      _
    $region11: #{tpu_custom_call.1} parent=1 // pred_check_branch
      %43 = sbr.rel (0) target = $region13
    $region12: #{tpu_custom_call.1} parent=1 // pred_region
      %44 = dma.done [#allocation3], 256
    $region13: #{tpu_custom_call.1} parent=1 // pred_fallthru
      _
    // Predicated region
    $region14: #{tpu_custom_call.1} parent=1 // pred_check
      _
    $region15: #{tpu_custom_call.1} parent=1 // pred_check_branch
      %46 = sbr.rel (0) target = $region17
    $region16: #{tpu_custom_call.1} parent=1 // pred_region
      %47 = dma.done [#allocation6], 256
    $region17: #{tpu_custom_call.1} parent=1 // pred_fallthru
      _
    %s48 = sadd.s32 0, 0
    %s49 = smul.u32 2, %s48
    %s50 = sadd.s32 0, 0
    %s51 = smul.u32 2, %s50
    %p52 = scmp.eq.s32.totalorder 0, 0
    // Predicated region
    $region18: #{tpu_custom_call.1} parent=1 // pred_check
      %p53 = pneg %p52
    $region19: #{tpu_custom_call.1} parent=1 // pred_check_branch
      %55 = sbr.rel (%p53) target = $region21
    $region20: #{tpu_custom_call.1} parent=1 // pred_region
      %56 = vst [vmem:[#allocation7] sm:$0xff] 0.0
    $region21: #{tpu_custom_call.1} parent=1 // pred_fallthru
      _
    %v57 = vld [vmem:[#allocation2] sm:$0xff]
    %v58 = vld [vmem:[#allocation2 + $0x8] sm:$0xff]
    %v59 = vld [vmem:[#allocation5] sm:$0xff]
    %v60 = vld [vmem:[#allocation5 + $0x8] sm:$0xff]
    %v61 = vand.u32 2147483647, %v57
    %v62 = vand.u32 2147483647, %v58
    %v63 = vsub.f32 0.0, %v61
    %v64 = vsub.f32 0.0, %v62
    %v65 = vmul.f32 %v63, 1.442695
    %v66 = vpow.pop %v65
    %v67 = vmul.f32 %v64, 1.442695
    %v68 = vpow.pop %v67
    %v69 = vmax.f32 %v57, 0.0
    %v70 = vmax.f32 %v58, 0.0
    %v71 = vmul.f32 %v57, %v59
    %v72 = vmul.f32 %v58, %v60
    %v73 = vsub.f32 %v69, %v71
    %v74 = vsub.f32 %v70, %v72
    %v75 = vadd.f32 %v66, 1.0
    %v76 = vlog2.pop %v75
    %v77 = vmul.f32 %v76, 0.6931472
    %v78 = vmul.f32 -0.5, %v66
    %v79 = vadd.f32 %v78, 1.0
    %v80 = vmul.f32 %v79, %v66
    %v81 = vand.u32 2147483647, %v66
    %vm82 = vcmp.lt.f32.partialorder %v81, 0.0004427343
    %v83 = vsel %vm82, %v80, %v77
    %v84 = vadd.f32 %v68, 1.0
    %v85 = vlog2.pop %v84
    %v86 = vmul.f32 %v85, 0.6931472
    %v87 = vmul.f32 -0.5, %v68
    %v88 = vadd.f32 %v87, 1.0
    %v89 = vmul.f32 %v88, %v68
    %v90 = vand.u32 2147483647, %v68
    %vm91 = vcmp.lt.f32.partialorder %v90, 0.0004427343
    %v92 = vsel %vm91, %v89, %v86
    %v93 = vadd.f32 %v73, %v83
    %v94 = vadd.f32 %v74, %v92
    %v95 = vadd.f32 %v66, 1.0
    %v96 = vadd.f32 %v68, 1.0
    %v97 = vrcp.pop %v95
    %v98 = vmul.f32 1.0, %v97
    %v99 = vrcp.pop %v96
    %v100 = vmul.f32 1.0, %v99
    %vm101 = vcmp.ge.f32.partialorder %v57, 0.0
    %vm102 = vcmp.ge.f32.partialorder %v58, 0.0
    %v103 = vmul.f32 %v66, %v98
    %v104 = vmul.f32 %v68, %v100
    %v105 = vsel %vm101, %v98, %v103
    %v106 = vsel %vm102, %v100, %v104
    %v107 = vsub.f32 %v105, %v59
    %v108 = vsub.f32 %v106, %v60
    %v109 = vsub.f32 %v107, 1.0
    %v110 = vsub.f32 %v108, 1.0
    %v111 = vmul.f32 %v109, 19.96008
    %v112 = vmul.f32 %v110, 19.96008
    %v113 = vmul.f32 %v111, 1.442695
    %v114 = vpow.pop %v113
    %v115 = vmul.f32 %v112, 1.442695
    %v116 = vpow.pop %v115
    %v117 = vsub.f32 1.0, %v114
    %v118 = vsub.f32 1.0, %v116
    %v119 = vmul.f32 %v93, %v117
    %v120 = vmul.f32 %v94, %v118
    %v121 = vld [vmem:[#allocation7] sm:$0xff]
    %v122 = vadd.f32 %v119, %v120
    %v123 = vadd.f32 %v121, %v122
    %124 = vst [vmem:[#allocation7] sm:$0xff] %v123
    // Predicated region
    $region22: #{tpu_custom_call.1} parent=1 // pred_check
      _
    $region23: #{tpu_custom_call.1} parent=1 // pred_check_branch
      %126 = sbr.rel (0) target = $region25
    $region24: #{tpu_custom_call.1} parent=1 // pred_region
      %s128 = ssub.s32 128, 128
      %129 = vsyncadd [#allocation4], %s128
      %s131 = sshll.u32 [#allocation7], 4
      %s132 = int_to_ptr.vmem [resolvable:$true] %s131
      %134 = dma.vmem_to_hbm [thread:$0]  %s132, 128, %s2, [#allocation4]
    $region25: #{tpu_custom_call.1} parent=1 // pred_fallthru
      _
    // Predicated region
    $region26: #{tpu_custom_call.1} parent=1 // pred_check
      _
    $region27: #{tpu_custom_call.1} parent=1 // pred_check_branch
      %136 = sbr.rel (0) target = $region29
    $region28: #{tpu_custom_call.1} parent=1 // pred_region
      %137 = dma.done [#allocation4], 128
    $region29: #{tpu_custom_call.1} parent=1 // pred_fallthru
      _
    %138 = vsyncpa [#allocation3], 1
    %139 = vsyncpa [#allocation6], 1
    %140 = vsyncpa [#allocation4], 1

</llo_original>
